<compile_context>
chip_gen: v5e
topology: v5e:2x2
jax: 0.10.0
libtpu: 0.0.40
codegen_flags: <defaults>
</compile_context>

<pallas_src>
import jax
import jax.numpy as jnp
from jax.experimental import pallas as pl
from jax.experimental.pallas import tpu as pltpu

EPS = 0.01


def _pick_row_tile(S, bs, max_tr=2048):
    """Largest multiple-of-8 sublane tile TR that divides S, capped at max_tr.

    When bs == 1, keep >= 4 grid cells (ideally) so both v7x TensorCores get work."""
    cands = [t for t in range(8, min(max_tr, S) + 1, 8) if S % t == 0]
    if not cands:
        return S
    min_tiles = 4 if bs == 1 else 1
    for req in sorted({min_tiles, 2, 1}, reverse=True):
        ok = [t for t in cands if S // t >= req]
        if ok:
            return max(ok)
    return max(cands)


def _pick_chunk(tr, max_rc=256):
    """Inner-loop chunk (sublane rows) dividing TR; bounds live vreg/spill pressure."""
    if tr <= max_rc:
        return tr
    for rc in range(max_rc, 7, -8):
        if tr % rc == 0:
            return rc
    return 8


def _make_project_kernel(W, TR, RC):
    scale = 2.0 / float(W - 1)
    separable = (W % 128 == 0)
    m = W // 128 if separable else 0
    inv_m = (1.0 / float(m)) if separable else 0.0
    inv_w = 1.0 / float(W)
    n_chunks = TR // RC

    def project_kernel(p_ref, d_ref, out_ref):
        """One (batch, point-tile) grid cell of project_pts.

        p_ref   : (bs, 12) f32 in SMEM — rows 0..2 of the folded camera matrix.
        d_ref   : (1, TR, 128)          — predicted depths, (sublane, lane)-dense.
        out_ref : (1, 3, TR, 128)       — sampler rows (channel-major).
        """
        b = pl.program_id(0)
        n = pl.program_id(1)

        # 12 scalar coefficients of the folded camera matrix, read from SMEM.
        p00 = p_ref[b, 0]; p01 = p_ref[b, 1]; p02 = p_ref[b, 2];  p03 = p_ref[b, 3]
        p10 = p_ref[b, 4]; p11 = p_ref[b, 5]; p12 = p_ref[b, 6];  p13 = p_ref[b, 7]
        p20 = p_ref[b, 8]; p21 = p_ref[b, 9]; p22 = p_ref[b, 10]; p23 = p_ref[b, 11]

        tile_base = n * TR  # global sublane-group offset of this tile

        lane = jax.lax.broadcasted_iota(jnp.int32, (RC, 128), 1).astype(jnp.float32)
        sub = jax.lax.broadcasted_iota(jnp.int32, (RC, 128), 0).astype(jnp.float32)

        @pl.loop(0, n_chunks)
        def _(ci):
            off_raw = ci * RC
            off = pl.multiple_of(off_raw, 8) if RC % 8 == 0 else off_raw

            d = d_ref[0, pl.ds(off, RC), :]  # (RC, 128) depths

            # Synthesize pixel-ray coords from the global point index
            # (point idx = 128*sublane_group + lane, row-major over the WxW grid).
            s = sub + (tile_base + off_raw).astype(jnp.float32)
            if separable:
                # W % 128 == 0: row/col separate over sublane groups / lanes.
                # floor((s+0.5)/m) is exact for any realistic W (err ~ row * 2^-24).
                row = jnp.floor((s + 0.5) * inv_m)
                col = (s - row * m) * 128.0 + lane
            else:
                idx = s * 128.0 + lane
                # exact while W*W < 2**23 (i.e. W <= 2896)
                row = jnp.floor((idx + 0.5) * inv_w)
                col = idx - row * W

            xs = col * scale - 1.0
            ys = row * scale - 1.0

            # projected_coors = xyzs * pts3D with the homogeneous row forced to 1:
            #   c = [xs*d, -ys*d, -d, 1]
            c0 = xs * d
            c1 = -(ys * d)
            c2 = -d

            # xy_proj rows = P[0:3] @ c, as scalar-coefficient FMAs (VPU only).
            z = p20 * c0 + p21 * c1 + p22 * c2 + p23
            mask = jnp.abs(z) < EPS
            zs = jnp.where(mask, jnp.float32(EPS), z)

            a = -zs
            inv = pl.reciprocal(a, approx=True)  # EUP slot
            inv = inv * (2.0 - a * inv)          # one Newton step -> ~f32 exact

            ten = jnp.float32(10.0)
            # sampler = [xy0/-z, xy1/-z, z]; masked -> -10; then * [1, -1, -1].
            # Rows are computed/stored one at a time as full (RC, 128) tiles.
            out_ref[0, 2, pl.ds(off, RC), :] = jnp.where(mask, ten, -zs)

            x0 = p00 * c0 + p01 * c1 + p02 * c2 + p03
            out_ref[0, 0, pl.ds(off, RC), :] = jnp.where(mask, -ten, x0 * inv)

            x1 = p10 * c0 + p11 * c1 + p12 * c2 + p13
            out_ref[0, 1, pl.ds(off, RC), :] = jnp.where(mask, ten, -(x1 * inv))

    return project_kernel


class PtsManipulatorPallas:
    """JAX/Pallas port of PtsManipulator (projection part)."""

    def __init__(self, W, C=64, max_tr=2048, chunk=256):
        self.W = W
        self.C = C
        self.max_tr = max_tr
        self.chunk = chunk
        # Kept only for parity with the torch buffer / the pure-JAX reference;
        # the kernel synthesizes these rays in-register and never reads this.
        lin = jnp.linspace(0.0, W - 1, W, dtype=jnp.float32) / float(W - 1) * 2.0 - 1.0
        xs = jnp.broadcast_to(lin[None, None, None, :], (1, 1, W, W))
        ys = jnp.broadcast_to(lin[None, None, :, None], (1, 1, W, W))
        self.xyzs = jnp.concatenate(
            [xs, -ys, -jnp.ones_like(xs), jnp.ones_like(xs)], axis=1
        ).reshape(1, 4, W * W)

    def project_pts(self, pts3D, K, K_inv, RT_cam1, RTinv_cam1, RT_cam2, RTinv_cam2):
        bs = pts3D.shape[0]
        N = self.W * self.W

        # Fold the camera chain into one per-batch matrix (tiny (bs,4,4) einsums in
        # the wrapper, instead of chained matmuls per grid cell in the kernel).
        hi = jax.lax.Precision.HIGHEST
        P = jnp.einsum("bij,bjk->bik", RT_cam2, RTinv_cam1, precision=hi)
        P = jnp.einsum("bij,bjk->bik", P, K_inv, precision=hi)
        P = jnp.einsum("bij,bjk->bik", K, P, precision=hi).astype(jnp.float32)
        P = P[:, :3, :].reshape(bs, 12)  # only rows 0..2 are needed

        # Sublane-dense point layout: pad N to a multiple of 8*128 and view the
        # point axis as (S, 128) so vector tiles are (sublane, lane) dense.
        d = pts3D.reshape(bs, N).astype(jnp.float32)
        N_pad = ((N + 1023) // 1024) * 1024
        if N_pad != N:
            d = jnp.pad(d, ((0, 0), (0, N_pad - N)))
        S = N_pad // 128
        d = d.reshape(bs, S, 128)

        TR = _pick_row_tile(S, bs, self.max_tr)
        RC = _pick_chunk(TR, self.chunk)
        kernel = _make_project_kernel(self.W, TR, RC)

        out = pl.pallas_call(
            kernel,
            out_shape=jax.ShapeDtypeStruct((bs, 3, S, 128), jnp.float32),
            grid_spec=pltpu.PrefetchScalarGridSpec(
                num_scalar_prefetch=0,
                grid=(bs, S // TR),
                in_specs=[
                    # folded camera matrices: 12 scalars / batch, resident in SMEM
                    pl.BlockSpec(memory_space=pltpu.MemorySpace.SMEM),
                    # depths: (sublane, lane)-dense tile
                    pl.BlockSpec((1, TR, 128), lambda b, n: (b, n, 0)),
                ],
                out_specs=pl.BlockSpec((1, 3, TR, 128), lambda b, n: (b, 0, n, 0)),
            ),
            compiler_params=pltpu.CompilerParams(
                dimension_semantics=("parallel", "parallel"),
                vmem_limit_bytes=32 * 1024 * 1024,
            ),
        )(P, d)

        sampler = out.reshape(bs, 3, N_pad)
        if N_pad != N:
            sampler = sampler[:, :, :N]
        return sampler

    def forward(self, alphas, src, pred_pts, K, K_inv, RT_cam1, RTinv_cam1,
                RT_cam2, RTinv_cam2):
        bs, c, w, h = src.shape
        pred_pts = pred_pts.reshape(bs, 1, -1)
        src = src.reshape(bs, c, -1)
        alphas = jnp.transpose(alphas.reshape(bs, 1, -1), (0, 2, 1))

        sampler = self.project_pts(pred_pts, K, K_inv, RT_cam1, RTinv_cam1,
                                   RT_cam2, RTinv_cam2)
        # Perf: the sampler stays channel-major (bs, 3, N).  The torch code's
        # .permute(0, 2, 1).contiguous() would cost a full extra HBM pass (~ the whole
        # kernel's traffic); that permute should be fused into the rasterizer consumer.
        # TODO(synk): RasterizePointsXYsBlending (pytorch3d z-buffered point splatter)
        # has no clean Pallas equivalent; return the tensors it would consume.
        return sampler, alphas, src


# ---------------- pure-JAX reference for verification ----------------
def project_pts_ref(xyzs, pts3D, K, K_inv, RT_cam2, RTinv_cam1):
    coors = xyzs * pts3D
    coors = coors.at[:, -1, :].set(1.0)
    hi = jax.lax.Precision.HIGHEST
    cam1_x = jnp.einsum("bij,bjn->bin", K_inv, coors, precision=hi)
    rt = jnp.einsum("bij,bjk->bik", RT_cam2, RTinv_cam1, precision=hi)
    wrld_x = jnp.einsum("bij,bjn->bin", rt, cam1_x, precision=hi)
    xy_proj = jnp.einsum("bij,bjn->bin", K, wrld_x, precision=hi)
    z = xy_proj[:, 2:3, :]
    mask = jnp.abs(z) < EPS
    zs = jnp.where(mask, EPS, z)
    sampler = jnp.concatenate([xy_proj[:, 0:2, :] / (-zs), zs], axis=1)
    sampler = jnp.where(jnp.broadcast_to(mask, sampler.shape), -10.0, sampler)
    sampler = sampler * jnp.array([1.0, -1.0, -1.0], jnp.float32).reshape(1, 3, 1)
    return sampler, z


def _run_case(W, bs, C):
    key = jax.random.PRNGKey(0)
    k1, k2, k3, k4, k5, k6 = jax.random.split(key, 6)

    src = jax.random.normal(k1, (bs, C, W, W), jnp.float32)
    alphas = jax.random.uniform(k2, (bs, 1, W, W), dtype=jnp.float32)
    pred_pts = jax.random.uniform(k3, (bs, 1, W, W), dtype=jnp.float32,
                                  minval=1.0, maxval=3.0)

    def rand_mat(k):
        return (jax.random.normal(k, (bs, 4, 4), jnp.float32) * 0.1
                + jnp.eye(4, dtype=jnp.float32)[None])

    K = rand_mat(k4)
    K_inv = jnp.linalg.inv(K)
    RT_cam1 = rand_mat(k5)
    RTinv_cam1 = jnp.linalg.inv(RT_cam1)
    RT_cam2 = rand_mat(k6)
    RTinv_cam2 = jnp.linalg.inv(RT_cam2)

    manip = PtsManipulatorPallas(W, C=C)
    sampler, alphas_pts, src_flat = manip.forward(
        alphas, src, pred_pts, K, K_inv, RT_cam1, RTinv_cam1, RT_cam2, RTinv_cam2)
    jax.block_until_ready(sampler)

    N = W * W
    assert sampler.shape == (bs, 3, N)
    assert alphas_pts.shape == (bs, N, 1)
    assert src_flat.shape == (bs, C, N)

    ref, z_ref = project_pts_ref(manip.xyzs, pred_pts.reshape(bs, 1, -1),
                                 K, K_inv, RT_cam2, RTinv_cam1)
    # Exclude points whose |z| sits within 1e-3 of the EPS mask boundary: there the
    # folded-P rounding can legitimately flip the +-10 masking vs the chained ref.
    far = jnp.broadcast_to(jnp.abs(jnp.abs(z_ref) - EPS) > 1e-3, ref.shape)
    atol, rtol = 2e-3, 2e-3
    close = jnp.abs(sampler - ref) <= atol + rtol * jnp.abs(ref)
    assert float(jnp.mean(far.astype(jnp.float32))) > 0.9
    assert bool(jnp.all(jnp.logical_or(close, jnp.logical_not(far)))), (
        f"mismatch vs reference (W={W}, bs={bs})")


if __name__ == "__main__":
    _run_case(W=16, bs=2, C=4)    # general ray-synthesis path (W % 128 != 0) + padding
    _run_case(W=128, bs=1, C=2)   # separable path, bs==1 multi-tile parallel grid
    print("KERNEL_OK")
</pallas_src>

<mosaic_0001>
module attributes {stable_mosaic.version = 11 : i64} {
  func.func @project_kernel(%arg0: i32, %arg1: i32, %arg2: memref<2x12xf32, #tpu.memory_space<smem>>, %arg3: memref<1x8x128xf32, #tpu.memory_space<vmem>>, %arg4: memref<1x3x8x128xf32, #tpu.memory_space<vmem>>) attributes {dimension_semantics = [#tpu.dimension_semantics<parallel>, #tpu.dimension_semantics<parallel>], iteration_bounds = array<i64: 2, 1>, scalar_prefetch = 0 : i64, scratch_operands = 0 : i64, tpu.core_type = #tpu.core_type<tc>, window_params = [{transform_indices = @transform_0, window_bounds = array<i64: 2, 12>}, {transform_indices = @transform_1, window_bounds = array<i64: 1, 8, 128>}, {transform_indices = @transform_2, window_bounds = array<i64: 1, 3, 8, 128>}]} {
    %0 = arith.index_cast %arg0 : i32 to index
    %c0 = arith.constant 0 : index
    %1 = memref.load %arg2[%0, %c0] : memref<2x12xf32, #tpu.memory_space<smem>>
    %2 = arith.index_cast %arg0 : i32 to index
    %c1 = arith.constant 1 : index
    %3 = memref.load %arg2[%2, %c1] : memref<2x12xf32, #tpu.memory_space<smem>>
    %4 = arith.index_cast %arg0 : i32 to index
    %c2 = arith.constant 2 : index
    %5 = memref.load %arg2[%4, %c2] : memref<2x12xf32, #tpu.memory_space<smem>>
    %6 = arith.index_cast %arg0 : i32 to index
    %c3 = arith.constant 3 : index
    %7 = memref.load %arg2[%6, %c3] : memref<2x12xf32, #tpu.memory_space<smem>>
    %8 = arith.index_cast %arg0 : i32 to index
    %c4 = arith.constant 4 : index
    %9 = memref.load %arg2[%8, %c4] : memref<2x12xf32, #tpu.memory_space<smem>>
    %10 = arith.index_cast %arg0 : i32 to index
    %c5 = arith.constant 5 : index
    %11 = memref.load %arg2[%10, %c5] : memref<2x12xf32, #tpu.memory_space<smem>>
    %12 = arith.index_cast %arg0 : i32 to index
    %c6 = arith.constant 6 : index
    %13 = memref.load %arg2[%12, %c6] : memref<2x12xf32, #tpu.memory_space<smem>>
    %14 = arith.index_cast %arg0 : i32 to index
    %c7 = arith.constant 7 : index
    %15 = memref.load %arg2[%14, %c7] : memref<2x12xf32, #tpu.memory_space<smem>>
    %16 = arith.index_cast %arg0 : i32 to index
    %c8 = arith.constant 8 : index
    %17 = memref.load %arg2[%16, %c8] : memref<2x12xf32, #tpu.memory_space<smem>>
    %18 = arith.index_cast %arg0 : i32 to index
    %c9 = arith.constant 9 : index
    %19 = memref.load %arg2[%18, %c9] : memref<2x12xf32, #tpu.memory_space<smem>>
    %20 = arith.index_cast %arg0 : i32 to index
    %c10 = arith.constant 10 : index
    %21 = memref.load %arg2[%20, %c10] : memref<2x12xf32, #tpu.memory_space<smem>>
    %22 = arith.index_cast %arg0 : i32 to index
    %c11 = arith.constant 11 : index
    %23 = memref.load %arg2[%22, %c11] : memref<2x12xf32, #tpu.memory_space<smem>>
    %c8_i32 = arith.constant 8 : i32
    %24 = arith.muli %arg1, %c8_i32 : i32
    %25 = tpu.iota {dimensions = array<i32: 1>} : vector<8x128xi32>
    %26 = arith.sitofp %25 : vector<8x128xi32> to vector<8x128xf32>
    %27 = tpu.iota {dimensions = array<i32: 0>} : vector<8x128xi32>
    %28 = arith.sitofp %27 : vector<8x128xi32> to vector<8x128xf32>
    %c0_i32 = arith.constant 0 : i32
    %c1_i32 = arith.constant 1 : i32
    %29 = arith.muli %c0_i32, %c1_i32 : i32
    %c0_i32_0 = arith.constant 0 : i32
    %30 = arith.addi %c0_i32_0, %29 : i32
    %c8_i32_1 = arith.constant 8 : i32
    %31 = arith.muli %30, %c8_i32_1 : i32
    %32 = tpu.assume_multiple %31, 8 : i32
    %c0_2 = arith.constant 0 : index
    %33 = arith.index_cast %32 : i32 to index
    %c0_3 = arith.constant 0 : index
    %34 = vector.load %arg3[%c0_2, %33, %c0_3] : memref<1x8x128xf32, #tpu.memory_space<vmem>>, vector<1x8x128xf32>
    %35 = vector.shape_cast %34 : vector<1x8x128xf32> to vector<8x128xf32>
    %36 = arith.addi %24, %31 : i32
    %37 = arith.sitofp %36 : i32 to f32
    %38 = vector.broadcast %37 : f32 to vector<8x128xf32>
    %39 = arith.addf %28, %38 : vector<8x128xf32>
    %cst = arith.constant 1.280000e+02 : f32
    %40 = vector.broadcast %cst : f32 to vector<8x128xf32>
    %41 = arith.mulf %39, %40 : vector<8x128xf32>
    %42 = arith.addf %41, %26 : vector<8x128xf32>
    %cst_4 = arith.constant 5.000000e-01 : f32
    %43 = vector.broadcast %cst_4 : f32 to vector<8x128xf32>
    %44 = arith.addf %42, %43 : vector<8x128xf32>
    %cst_5 = arith.constant 6.250000e-02 : f32
    %45 = vector.broadcast %cst_5 : f32 to vector<8x128xf32>
    %46 = arith.mulf %44, %45 : vector<8x128xf32>
    %47 = math.floor %46 : vector<8x128xf32>
    %cst_6 = arith.constant 1.600000e+01 : f32
    %48 = vector.broadcast %cst_6 : f32 to vector<8x128xf32>
    %49 = arith.mulf %47, %48 : vector<8x128xf32>
    %50 = arith.subf %42, %49 : vector<8x128xf32>
    %cst_7 = arith.constant 0.13333334 : f32
    %51 = vector.broadcast %cst_7 : f32 to vector<8x128xf32>
    %52 = arith.mulf %50, %51 : vector<8x128xf32>
    %cst_8 = arith.constant 1.000000e+00 : f32
    %53 = vector.broadcast %cst_8 : f32 to vector<8x128xf32>
    %54 = arith.subf %52, %53 : vector<8x128xf32>
    %cst_9 = arith.constant 0.13333334 : f32
    %55 = vector.broadcast %cst_9 : f32 to vector<8x128xf32>
    %56 = arith.mulf %47, %55 : vector<8x128xf32>
    %cst_10 = arith.constant 1.000000e+00 : f32
    %57 = vector.broadcast %cst_10 : f32 to vector<8x128xf32>
    %58 = arith.subf %56, %57 : vector<8x128xf32>
    %59 = arith.mulf %54, %35 : vector<8x128xf32>
    %60 = arith.mulf %58, %35 : vector<8x128xf32>
    %cst_11 = arith.constant 0.000000e+00 : f32
    %61 = vector.broadcast %cst_11 : f32 to vector<8x128xf32>
    %62 = arith.subf %61, %60 : vector<8x128xf32>
    %cst_12 = arith.constant 0.000000e+00 : f32
    %63 = vector.broadcast %cst_12 : f32 to vector<8x128xf32>
    %64 = arith.subf %63, %35 : vector<8x128xf32>
    %65 = vector.broadcast %17 : f32 to vector<8x128xf32>
    %66 = arith.mulf %65, %59 : vector<8x128xf32>
    %67 = vector.broadcast %19 : f32 to vector<8x128xf32>
    %68 = arith.mulf %67, %62 : vector<8x128xf32>
    %69 = arith.addf %66, %68 : vector<8x128xf32>
    %70 = vector.broadcast %21 : f32 to vector<8x128xf32>
    %71 = arith.mulf %70, %64 : vector<8x128xf32>
    %72 = arith.addf %69, %71 : vector<8x128xf32>
    %73 = vector.broadcast %23 : f32 to vector<8x128xf32>
    %74 = arith.addf %72, %73 : vector<8x128xf32>
    %75 = math.absf %74 : vector<8x128xf32>
    %cst_13 = arith.constant 0.00999999977 : f32
    %76 = vector.broadcast %cst_13 : f32 to vector<8x128xf32>
    %77 = arith.cmpf olt, %75, %76 : vector<8x128xf32>
    %cst_14 = arith.constant 0.00999999977 : f32
    %78 = vector.broadcast %cst_14 : f32 to vector<8x128xf32>
    %79 = arith.select %77, %78, %74 : vector<8x128xi1>, vector<8x128xf32>
    %cst_15 = arith.constant 0.000000e+00 : f32
    %80 = vector.broadcast %cst_15 : f32 to vector<8x128xf32>
    %81 = arith.subf %80, %79 : vector<8x128xf32>
    %82 = tpu.reciprocal %81 {approx = true} : vector<8x128xf32> -> vector<8x128xf32>
    %83 = arith.mulf %81, %82 : vector<8x128xf32>
    %cst_16 = arith.constant 2.000000e+00 : f32
    %84 = vector.broadcast %cst_16 : f32 to vector<8x128xf32>
    %85 = arith.subf %84, %83 : vector<8x128xf32>
    %86 = arith.mulf %82, %85 : vector<8x128xf32>
    %cst_17 = arith.constant 0.000000e+00 : f32
    %87 = vector.broadcast %cst_17 : f32 to vector<8x128xf32>
    %88 = arith.subf %87, %79 : vector<8x128xf32>
    %cst_18 = arith.constant 1.000000e+01 : f32
    %89 = vector.broadcast %cst_18 : f32 to vector<8x128xf32>
    %90 = arith.select %77, %89, %88 : vector<8x128xi1>, vector<8x128xf32>
    %c0_19 = arith.constant 0 : index
    %c2_20 = arith.constant 2 : index
    %91 = arith.index_cast %32 : i32 to index
    %c0_21 = arith.constant 0 : index
    %92 = vector.load %arg4[%c0_19, %c2_20, %91, %c0_21] : memref<1x3x8x128xf32, #tpu.memory_space<vmem>>, vector<1x1x8x128xf32>
    %93 = vector.shape_cast %92 : vector<1x1x8x128xf32> to vector<8x128xf32>
    %94 = vector.shape_cast %90 : vector<8x128xf32> to vector<1x1x8x128xf32>
    tpu.vector_store %arg4[%c0_19, %c2_20, %91, %c0_21], %94 {strides = array<i32>} : memref<1x3x8x128xf32, #tpu.memory_space<vmem>>, vector<1x1x8x128xf32>,
    %95 = vector.broadcast %1 : f32 to vector<8x128xf32>
    %96 = arith.mulf %95, %59 : vector<8x128xf32>
    %97 = vector.broadcast %3 : f32 to vector<8x128xf32>
    %98 = arith.mulf %97, %62 : vector<8x128xf32>
    %99 = arith.addf %96, %98 : vector<8x128xf32>
    %100 = vector.broadcast %5 : f32 to vector<8x128xf32>
    %101 = arith.mulf %100, %64 : vector<8x128xf32>
    %102 = arith.addf %99, %101 : vector<8x128xf32>
    %103 = vector.broadcast %7 : f32 to vector<8x128xf32>
    %104 = arith.addf %102, %103 : vector<8x128xf32>
    %cst_22 = arith.constant 0.000000e+00 : f32
    %cst_23 = arith.constant 1.000000e+01 : f32
    %105 = arith.subf %cst_22, %cst_23 : f32
    %106 = arith.mulf %104, %86 : vector<8x128xf32>
    %107 = vector.broadcast %105 : f32 to vector<8x128xf32>
    %108 = arith.select %77, %107, %106 : vector<8x128xi1>, vector<8x128xf32>
    %c0_24 = arith.constant 0 : index
    %c0_25 = arith.constant 0 : index
    %109 = arith.index_cast %32 : i32 to index
    %c0_26 = arith.constant 0 : index
    %110 = vector.load %arg4[%c0_24, %c0_25, %109, %c0_26] : memref<1x3x8x128xf32, #tpu.memory_space<vmem>>, vector<1x1x8x128xf32>
    %111 = vector.shape_cast %110 : vector<1x1x8x128xf32> to vector<8x128xf32>
    %112 = vector.shape_cast %108 : vector<8x128xf32> to vector<1x1x8x128xf32>
    tpu.vector_store %arg4[%c0_24, %c0_25, %109, %c0_26], %112 {strides = array<i32>} : memref<1x3x8x128xf32, #tpu.memory_space<vmem>>, vector<1x1x8x128xf32>,
    %113 = vector.broadcast %9 : f32 to vector<8x128xf32>
    %114 = arith.mulf %113, %59 : vector<8x128xf32>
    %115 = vector.broadcast %11 : f32 to vector<8x128xf32>
    %116 = arith.mulf %115, %62 : vector<8x128xf32>
    %117 = arith.addf %114, %116 : vector<8x128xf32>
    %118 = vector.broadcast %13 : f32 to vector<8x128xf32>
    %119 = arith.mulf %118, %64 : vector<8x128xf32>
    %120 = arith.addf %117, %119 : vector<8x128xf32>
    %121 = vector.broadcast %15 : f32 to vector<8x128xf32>
    %122 = arith.addf %120, %121 : vector<8x128xf32>
    %123 = arith.mulf %122, %86 : vector<8x128xf32>
    %cst_27 = arith.constant 0.000000e+00 : f32
    %124 = vector.broadcast %cst_27 : f32 to vector<8x128xf32>
    %125 = arith.subf %124, %123 : vector<8x128xf32>
    %cst_28 = arith.constant 1.000000e+01 : f32
    %126 = vector.broadcast %cst_28 : f32 to vector<8x128xf32>
    %127 = arith.select %77, %126, %125 : vector<8x128xi1>, vector<8x128xf32>
    %c0_29 = arith.constant 0 : index
    %c1_30 = arith.constant 1 : index
    %128 = arith.index_cast %32 : i32 to index
    %c0_31 = arith.constant 0 : index
    %129 = vector.load %arg4[%c0_29, %c1_30, %128, %c0_31] : memref<1x3x8x128xf32, #tpu.memory_space<vmem>>, vector<1x1x8x128xf32>
    %130 = vector.shape_cast %129 : vector<1x1x8x128xf32> to vector<8x128xf32>
    %131 = vector.shape_cast %127 : vector<8x128xf32> to vector<1x1x8x128xf32>
    tpu.vector_store %arg4[%c0_29, %c1_30, %128, %c0_31], %131 {strides = array<i32>} : memref<1x3x8x128xf32, #tpu.memory_space<vmem>>, vector<1x1x8x128xf32>,
    %c1_i32_32 = arith.constant 1 : i32
    return
  }
  func.func @transform_0(%arg0: i32, %arg1: i32) -> (i32, i32) {
    %c0_i32 = arith.constant 0 : i32
    %c0_i32_0 = arith.constant 0 : i32
    %c0_i32_1 = arith.constant 0 : i32
    return %c0_i32, %c0_i32_0 : i32, i32
  }
  func.func @transform_1(%arg0: i32, %arg1: i32) -> (i32, i32, i32) {
    %c0_i32 = arith.constant 0 : i32
    %c0_i32_0 = arith.constant 0 : i32
    return %arg0, %arg1, %c0_i32 : i32, i32, i32
  }
  func.func @transform_2(%arg0: i32, %arg1: i32) -> (i32, i32, i32, i32) {
    %c0_i32 = arith.constant 0 : i32
    %c0_i32_0 = arith.constant 0 : i32
    %c0_i32_1 = arith.constant 0 : i32
    return %arg0, %c0_i32, %arg1, %c0_i32_0 : i32, i32, i32, i32
  }
}

</mosaic_0001>

<llo_original>
// kernel: tpu_custom_call.1
$region0: #{tpu_custom_call.1}
  #allocation0 [shape = 'u32[]', space=smem, size = 0x4, offset = 0x4, fixed_abs, tag = 'smem constant byte address 0x4 - core index']
  #allocation1 [shape = 'u32[72,128]{1,0:T(1,128)}', space=vmem, size = 0x9000, scoped, tag = 'internal scratch']
  %s0 = inlined_call_operand.hbm [shape: f32[2,12], index: 0, kind: input, shape index: {}]
  %s1 = inlined_call_operand.hbm [shape: f32[2,8,128], index: 1, kind: input, shape index: {}]
  %s2 = inlined_call_operand.hbm [shape: f32[2,3,8,128], index: 2, kind: output, shape index: {}]
  %s3 = sld [smem:[#allocation0]]
  $region49: #{tpu_custom_call.1} parent=0
    _
  %s5 = ssub.s32 1, %s3
  %s6 = scalar_select 0, %s5, %s3
  $region1: #{tpu_custom_call.1} parent=0
    #allocation2 [shape = 'u8[1024]{0}', space=smem, size = 0x400, scoped, tag = 'input window, operand 0, single buffered']
    #allocation3 [shape = 's32[2]{0}', space=sflag, size = 0x8, scoped, tag = 'scoped memory for tpu_custom_call.1']
    #allocation4 [shape = 's32[2]{0}', space=sflag, size = 0x8, scoped, tag = 'scoped memory for tpu_custom_call.1']
    #allocation5 [shape = 's32[2]{0}', space=sflag, size = 0x8, scoped, tag = 'scoped memory for tpu_custom_call.1']
    #allocation6 [shape = 'u8[8192]{0}', space=vmem, size = 0x2000, scoped, tag = 'input window, operand 1']
    #allocation7 [shape = 'u8[24576]{0}', space=vmem, size = 0x6000, scoped, tag = 'output window, operand 0']
    %7 = vsyncpa [#allocation5], 0
    %8 = vsyncpa [#allocation3], 0
    %s9 = scalar_lea.sflag [#allocation3], 1
    %10 = vsyncpa %s9, 0
    %11 = vsyncpa [#allocation4], 0
    %s12 = scalar_lea.sflag [#allocation4], 1
    %13 = vsyncpa %s12, 0
    loop: start=0, step=1, limit=4
    $region2: #{tpu_custom_call.1} parent=1 // loop_pre_header
      _
    $region3: #{tpu_custom_call.1} parent=1 // loop_header
      %s15 = sphi 0, %s19
      %p16 = scmp.ge.s32.totalorder %s15, 4
      %s22 = sphi 0, %s34
      %s23 = sphi 0, %s30
      %s24 = sphi 0, %s22
      %s25 = sphi 0, %s23
      %s26 = sphi 0, %s24
      %s27 = sphi 0, %s25
      %s35 = sphi 0, %s35
      %s37 = sphi 0, %s35
      %s38 = sphi 0, %s37
      %s52 = sphi 0, %s38
      %s60 = sphi 0, %s62
      %s63 = sphi 0, %s60
      %s64 = sphi 0, %s63
      %s80 = sphi 0, %s64
      %s88 = sphi 0, %s90
      %s91 = sphi 0, %s88
      %s92 = sphi 0, %s91
      %s108 = sphi 0, %s92
    $region4: #{tpu_custom_call.1} parent=1 // loop_header_branch
      %18 = sbr.rel (%p16) target = $region8
    $region5: #{tpu_custom_call.1} parent=1 // loop_body
      %s20 = ssub.s32 %s15, 1
      %s21 = ssub.s32 %s15, 2
      %s28 = sadd.s32 1, %s23
      %p29 = scmp.ge.s32.totalorder %s28, 1
      %s30 = scalar_select %p29, 0, %s28
      %s31 = sadd.s32 1, %s22
      %s32 = scalar_select %p29, %s31, %s22
      %p33 = scmp.ge.s32.totalorder %s32, 2
      %s34 = scalar_select %p33, 0, %s32
      %s36 = sadd.s32 %s35, 1
      %p39 = scmp.eq.s32.totalorder %s15, 1
      %p40 = scmp.ne.s32.totalorder %s35, %s37
      %p41 = scmp.eq.s32.totalorder %s15, 0
      %p42 = por %p40, %p41
      %p43 = scmp.ne.s32.totalorder %s35, %s37
      %p44 = scmp.eq.s32.totalorder %s20, 1
      %p45 = por %p43, %p44
      %p46 = scmp.ne.s32.totalorder %s37, %s38
      %p47 = scmp.eq.s32.totalorder %s20, 0
      %p48 = por %p46, %p47
      %p49 = scmp.ne.s32.totalorder %s37, %s38
      %p50 = scmp.eq.s32.totalorder %s21, 1
      %p51 = por %p49, %p50
      %p53 = scmp.ne.s32.totalorder %s38, %s52
      %p54 = scmp.eq.s32.totalorder %s21, 0
      %p55 = por %p53, %p54
      %s56 = ssub.s32 %s22, %s34
      %s57 = ssub.s32 %s23, %s30
      %s58 = sor.u32 %s56, %s57
      %p59 = scmp.eq.s32.totalorder %s58, 0
      %s61 = sadd.s32 %s60, 1
      %s62 = scalar_select %p59, %s60, %s61
      %p65 = pneg %p59
      %p66 = scmp.eq.s32.totalorder %s15, 1
      %p67 = por %p65, %p66
      %p68 = scmp.ne.s32.totalorder %s60, %s63
      %p69 = scmp.eq.s32.totalorder %s15, 0
      %p70 = por %p68, %p69
      %p71 = scmp.ne.s32.totalorder %s60, %s63
      %p72 = scmp.eq.s32.totalorder %s20, 1
      %p73 = por %p71, %p72
      %p74 = scmp.ne.s32.totalorder %s63, %s64
      %p75 = scmp.eq.s32.totalorder %s20, 0
      %p76 = por %p74, %p75
      %p77 = scmp.ne.s32.totalorder %s63, %s64
      %p78 = scmp.eq.s32.totalorder %s21, 1
      %p79 = por %p77, %p78
      %p81 = scmp.ne.s32.totalorder %s64, %s80
      %p82 = scmp.eq.s32.totalorder %s21, 0
      %p83 = por %p81, %p82
      %s84 = ssub.s32 %s22, %s34
      %s85 = ssub.s32 %s23, %s30
      %s86 = sor.u32 %s84, %s85
      %p87 = scmp.eq.s32.totalorder %s86, 0
      %s89 = sadd.s32 %s88, 1
      %s90 = scalar_select %p87, %s88, %s89
      %p93 = pneg %p87
      %p94 = scmp.eq.s32.totalorder %s15, 1
      %p95 = por %p93, %p94
      %p96 = scmp.ne.s32.totalorder %s88, %s91
      %p97 = scmp.eq.s32.totalorder %s15, 0
      %p98 = por %p96, %p97
      %p99 = scmp.ne.s32.totalorder %s88, %s91
      %p100 = scmp.eq.s32.totalorder %s20, 1
      %p101 = por %p99, %p100
      %p102 = scmp.ne.s32.totalorder %s91, %s92
      %p103 = scmp.eq.s32.totalorder %s20, 0
      %p104 = por %p102, %p103
      %p105 = scmp.ne.s32.totalorder %s91, %s92
      %p106 = scmp.eq.s32.totalorder %s21, 1
      %p107 = por %p105, %p106
      %p109 = scmp.ne.s32.totalorder %s92, %s108
      %p110 = scmp.eq.s32.totalorder %s21, 0
      %p111 = por %p109, %p110
      %p112 = scmp.le.s32.totalorder 1, %s15
      %p113 = scmp.lt.s32.totalorder %s15, 3
      %p114 = pnand %p112, %p113
      %p115 = pneg %p114
      // Predicated region
      $region9: #{tpu_custom_call.1} parent=5 // pred_check
        _
      $region10: #{tpu_custom_call.1} parent=5 // pred_check_branch
        %117 = sbr.rel (%p114) target = $region12
      $region11: #{tpu_custom_call.1} parent=5 // pred_region
        %s118 = ssub.s32 %s15, 1
        // Predicated region
        $region13: #{tpu_custom_call.1} parent=11 // pred_check
          %p119 = pneg %p48
        $region14: #{tpu_custom_call.1} parent=11 // pred_check_branch
          %121 = sbr.rel (%p119) target = $region16
        $region15: #{tpu_custom_call.1} parent=11 // pred_region
          %123 = vsyncadd [#allocation5], 0
          %s125 = sshll.u32 %s0, 4
          %s126 = int_to_ptr.hbm [resolvable:$true] %s125
          %128 = dma.hbm_to_smem %s126, 32, [#allocation2], [#allocation5]
        $region16: #{tpu_custom_call.1} parent=11 // pred_fallthru
          _
      $region12: #{tpu_custom_call.1} parent=5 // pred_fallthru
        _
      %p129 = scmp.lt.s32.totalorder %s15, 2
      // Predicated region
      $region17: #{tpu_custom_call.1} parent=5 // pred_check
        %p130 = pneg %p129
      $region18: #{tpu_custom_call.1} parent=5 // pred_check_branch
        %132 = sbr.rel (%p130) target = $region20
      $region19: #{tpu_custom_call.1} parent=5 // pred_region
        // Predicated region
        $region21: #{tpu_custom_call.1} parent=19 // pred_check
          %p133 = pneg %p70
        $region22: #{tpu_custom_call.1} parent=19 // pred_check_branch
          %135 = sbr.rel (%p133) target = $region24
        $region23: #{tpu_custom_call.1} parent=19 // pred_region
          %s136 = sand.u32 %s60, 1
          %s137 = scalar_lea.sflag [#allocation3], %s136
          %s138 = sand.u32 %s60, 1
          %s139 = smul.addr %s138, 8
          %s140 = scalar_lea.vmem [#allocation6], %s139
          %142 = vsyncadd %s137, 0
          %s143 = sadd.s32 %s23, %s22
          %s144 = smul.addr %s143, 8
          %s145 = scalar_lea.hbm %s1, %s144
          %s147 = sshll.u32 %s145, 4
          %s148 = int_to_ptr.hbm [resolvable:$true] %s147
          %s149 = sshll.u32 %s140, 4
          %s150 = int_to_ptr.vmem [resolvable:$true] %s149
          %152 = dma.hbm_to_vmem [thread:$0]  %s148, 128, %s150, %s137
        $region24: #{tpu_custom_call.1} parent=19 // pred_fallthru
          _
      $region20: #{tpu_custom_call.1} parent=5 // pred_fallthru
        _
      %p153 = scmp.le.s32.totalorder 1, %s15
      %p154 = scmp.lt.s32.totalorder %s15, 3
      %p155 = pnand %p153, %p154
      %p156 = pneg %p155
      // Predicated region
      $region25: #{tpu_custom_call.1} parent=5 // pred_check
        _
      $region26: #{tpu_custom_call.1} parent=5 // pred_check_branch
        %158 = sbr.rel (%p155) target = $region28
      $region27: #{tpu_custom_call.1} parent=5 // pred_region
        %s159 = ssub.s32 %s15, 1
        // Predicated region
        $region29: #{tpu_custom_call.1} parent=27 // pred_check
          %p160 = pneg %p48
        $region30: #{tpu_custom_call.1} parent=27 // pred_check_branch
          %162 = sbr.rel (%p160) target = $region32
        $region31: #{tpu_custom_call.1} parent=27 // pred_region
          %164 = dma.done [#allocation5], 32
        $region32: #{tpu_custom_call.1} parent=27 // pred_fallthru
          _
        %s165 = sand.u32 %s63, 1
        %s166 = scalar_lea.sflag [#allocation3], %s165
        %s167 = sand.u32 %s63, 1
        %s168 = smul.addr %s167, 8
        %s169 = scalar_lea.vmem [#allocation6], %s168
        // Predicated region
        $region33: #{tpu_custom_call.1} parent=27 // pred_check
          %p170 = pneg %p76
        $region34: #{tpu_custom_call.1} parent=27 // pred_check_branch
          %172 = sbr.rel (%p170) target = $region36
        $region35: #{tpu_custom_call.1} parent=27 // pred_region
          %174 = dma.done %s166, 128
        $region36: #{tpu_custom_call.1} parent=27 // pred_fallthru
          _
        %175 = sfence
        %p176 = pneg %p48
        %p177 = pneg %p45
        %s178 = sand.u32 %s63, 1
        %s179 = scalar_lea.sflag [#allocation3], %s178
        %s180 = sand.u32 %s63, 1
        %s181 = smul.addr %s180, 8
        %s182 = scalar_lea.vmem [#allocation6], %s181
        %p183 = pneg %p76
        %p184 = pneg %p73
        %p185 = pneg %p104
        %p186 = pneg %p101
        %s187 = sand.u32 %s91, 1
        %s188 = scalar_lea.sflag [#allocation4], %s187
        %s189 = sand.u32 %s91, 1
        %s190 = smul.addr %s189, 24
        %s191 = scalar_lea.vmem [#allocation7], %s190
        %s192 = smul.u32 %s24, 128
        %s193 = sld [smem:[#allocation2 + %s192]]
        %s194 = sadd.s32 %s192, 1
        %s195 = sld [smem:[#allocation2 + %s194]]
        %s196 = sadd.s32 %s192, 2
        %s197 = sld [smem:[#allocation2 + %s196]]
        %s198 = sadd.s32 %s192, 3
        %s199 = sld [smem:[#allocation2 + %s198]]
        %s200 = sadd.s32 %s192, 4
        %s201 = sld [smem:[#allocation2 + %s200]]
        %s202 = sadd.s32 %s192, 5
        %s203 = sld [smem:[#allocation2 + %s202]]
        %s204 = sadd.s32 %s192, 6
        %s205 = sld [smem:[#allocation2 + %s204]]
        %s206 = sadd.s32 %s192, 7
        %s207 = sld [smem:[#allocation2 + %s206]]
        %s208 = sadd.s32 %s192, 8
        %s209 = sld [smem:[#allocation2 + %s208]]
        %s210 = sadd.s32 %s192, 9
        %s211 = sld [smem:[#allocation2 + %s210]]
        %s212 = sadd.s32 %s192, 10
        %s213 = sld [smem:[#allocation2 + %s212]]
        %s214 = sadd.s32 %s192, 11
        %s215 = sld [smem:[#allocation2 + %s214]]
        %s216 = smul.u32 %s25, 8
        %v217 = vlaneseq
        %v218 = vand.u32 %v217, 127
        %v219 = vcvt.s32.f32 %v218
        %v220 = vlaneseq
        %v221 = vshrl.u32 %v220, 7
        %v222 = vcvt.s32.f32 %v221
        %v223 = vld [vmem:[%s169] sm:$0xff]
        %s224 = scvt.s32.f32 %s216
        %v225 = vstv %s224
        %v226 = vadd.f32 %v222, %v225
        %v227 = vmul.f32 %v226, 128.0
        %v228 = vadd.f32 %v227, %v219
        %v229 = vadd.f32 %v228, 0.5
        %v230 = vmul.f32 %v229, 0.0625
        %v231 = vfloor.f32 %v230
        %v232 = vmul.f32 %v231, 16.0
        %v233 = vsub.f32 %v228, %v232
        %v234 = vmul.f32 %v233, 0.13333334
        %v235 = vsub.f32 %v234, 1.0
        %v236 = vmul.f32 %v231, 0.13333334
        %v237 = vsub.f32 %v236, 1.0
        %v238 = vmul.f32 %v235, %v223
        %v239 = vmul.f32 %v237, %v223
        %v240 = vsub.f32 0.0, %v239
        %v241 = vsub.f32 0.0, %v223
        %v242 = vstv %s209
        %v243 = vmul.f32 %v242, %v238
        %v244 = vstv %s211
        %v245 = vmul.f32 %v244, %v240
        %v246 = vadd.f32 %v243, %v245
        %v247 = vstv %s213
        %v248 = vmul.f32 %v247, %v241
        %v249 = vadd.f32 %v246, %v248
        %v250 = vstv %s215
        %v251 = vadd.f32 %v249, %v250
        %v252 = vand.u32 2147483647, %v251
        %vm253 = vcmp.lt.f32.partialorder %v252, 0.01
        %v254 = vsel %vm253, 0.01, %v251
        %v255 = vsub.f32 0.0, %v254
        %v256 = vrcp.pop %v255
        %v257 = vmul.f32 %v255, %v256
        %v258 = vsub.f32 2.0, %v257
        %v259 = vmul.f32 %v256, %v258
        %v260 = vsel %vm253, 10.0, %v255
        %s261 = sadd.s32 0, 16
        %s262 = scalar_lea.vmem %s191, %s261 [#allocation7]
        %263 = vst [vmem:[%s262] sm:$0xff] %v260
        %v264 = vstv %s193
        %v265 = vmul.f32 %v264, %v238
        %v266 = vstv %s195
        %v267 = vmul.f32 %v266, %v240
        %v268 = vadd.f32 %v265, %v267
        %v269 = vstv %s197
        %v270 = vmul.f32 %v269, %v241
        %v271 = vadd.f32 %v268, %v270
        %v272 = vstv %s199
        %v273 = vadd.f32 %v271, %v272
        %v274 = vmul.f32 %v273, %v259
        %v275 = vsel %vm253, -10.0, %v274
        %276 = vst [vmem:[%s191] sm:$0xff] %v275
        %v277 = vstv %s201
        %v278 = vmul.f32 %v277, %v238
        %v279 = vstv %s203
        %v280 = vmul.f32 %v279, %v240
        %v281 = vadd.f32 %v278, %v280
        %v282 = vstv %s205
        %v283 = vmul.f32 %v282, %v241
        %v284 = vadd.f32 %v281, %v283
        %v285 = vstv %s207
        %v286 = vadd.f32 %v284, %v285
        %v287 = vmul.f32 %v286, %v259
        %v288 = vsub.f32 0.0, %v287
        %v289 = vsel %vm253, 10.0, %v288
        %s290 = sadd.s32 0, 8
        %s291 = scalar_lea.vmem %s191, %s290 [#allocation7]
        %292 = vst [vmem:[%s291] sm:$0xff] %v289
        %s293 = sand.u32 %s91, 1
        %s294 = scalar_lea.sflag [#allocation4], %s293
        %s295 = sand.u32 %s91, 1
        %s296 = smul.addr %s295, 24
        %s297 = scalar_lea.vmem [#allocation7], %s296
        // Predicated region
        $region37: #{tpu_custom_call.1} parent=27 // pred_check
          %p298 = pneg %p101
        $region38: #{tpu_custom_call.1} parent=27 // pred_check_branch
          %300 = sbr.rel (%p298) target = $region40
        $region39: #{tpu_custom_call.1} parent=27 // pred_region
          %302 = vsyncadd %s294, 0
          %s303 = smul.addr %s24, 3
          %s304 = sadd.s32 %s25, %s303
          %s305 = smul.addr %s304, 8
          %s306 = scalar_lea.hbm %s2, %s305
          %s307 = sshll.u32 %s297, 4
          %s308 = int_to_ptr.vmem [resolvable:$true] %s307
          %s309 = sshll.u32 %s306, 4
          %s310 = int_to_ptr.hbm [resolvable:$true] %s309
          %315 = dma.vmem_to_hbm [thread:$0]  %s308, 384, %s310, %s294, 128, 128, 8
        $region40: #{tpu_custom_call.1} parent=27 // pred_fallthru
          _
      $region28: #{tpu_custom_call.1} parent=5 // pred_fallthru
        _
      %p316 = scmp.le.s32.totalorder 2, %s15
      // Predicated region
      $region41: #{tpu_custom_call.1} parent=5 // pred_check
        %p317 = pneg %p316
      $region42: #{tpu_custom_call.1} parent=5 // pred_check_branch
        %319 = sbr.rel (%p317) target = $region44
      $region43: #{tpu_custom_call.1} parent=5 // pred_region
        %s320 = ssub.s32 %s15, 2
        // Predicated region
        $region45: #{tpu_custom_call.1} parent=43 // pred_check
          %p321 = pneg %p107
        $region46: #{tpu_custom_call.1} parent=43 // pred_check_branch
          %323 = sbr.rel (%p321) target = $region48
        $region47: #{tpu_custom_call.1} parent=43 // pred_region
          %s324 = sand.u32 %s92, 1
          %s325 = scalar_lea.sflag [#allocation4], %s324
          %s326 = sand.u32 %s92, 1
          %s327 = smul.addr %s326, 24
          %s328 = scalar_lea.vmem [#allocation7], %s327
          %330 = dma.done %s325, 384
        $region48: #{tpu_custom_call.1} parent=43 // pred_fallthru
          _
      $region44: #{tpu_custom_call.1} parent=5 // pred_fallthru
        _
    $region6: #{tpu_custom_call.1} parent=1 // loop_footer
      %s19 = sadd.s32 1, %s15
    $region7: #{tpu_custom_call.1} parent=1 // loop_footer_branch
      %14 = sbr.rel target = $region3
    $region8: #{tpu_custom_call.1} parent=1 // loop_exit
      _
    %331 = vsyncpa [#allocation3], 1
    %s332 = scalar_lea.sflag [#allocation3], 1
    %333 = vsyncpa %s332, 1
    %334 = vsyncpa [#allocation4], 1
    %s335 = scalar_lea.sflag [#allocation4], 1
    %336 = vsyncpa %s335, 1
    %337 = vsyncpa [#allocation5], 1
    %s338 = scalar_lea.sflag [#allocation5], 1
    %339 = vsyncpa %s338, 1

</llo_original>
